<compile_context>
chip_gen: v5e
topology: v5e:2x2
jax: 0.10.0
libtpu: 0.0.40
codegen_flags: <defaults>
</compile_context>

<pallas_src>
import math

import jax
import jax.numpy as jnp
from jax.experimental import pallas as pl
from jax.experimental.pallas import tpu as pltpu


_KRON_BYTES_MAX = 2 * 1024 * 1024          # fast-path kron weight size cap
_MIB = 1024 * 1024


# ----------------------------------------------------------------------------
# Weight construction (matches PyTorch align_corners=False semantics).
# ----------------------------------------------------------------------------
def _interp_matrix(in_size: int, out_size: int) -> jnp.ndarray:
    """Row-stochastic (out_size, in_size) bilinear weight matrix matching
    PyTorch's align_corners=False (half-pixel-center) semantics."""
    scale = in_size / out_size
    out_idx = jnp.arange(out_size, dtype=jnp.float32)
    # half-pixel centers; PyTorch clamps negative source coords to 0
    src = jnp.maximum((out_idx + 0.5) * scale - 0.5, 0.0)
    i0 = jnp.minimum(jnp.floor(src).astype(jnp.int32), in_size - 1)
    i1 = jnp.minimum(i0 + 1, in_size - 1)
    l1 = src - i0.astype(jnp.float32)
    l0 = 1.0 - l1
    rows = jnp.arange(out_size)
    m = jnp.zeros((out_size, in_size), dtype=jnp.float32)
    m = m.at[rows, i0].add(l0)
    m = m.at[rows, i1].add(l1)
    return m


# ----------------------------------------------------------------------------
# VMEM sizing helpers (generation-aware).
# ----------------------------------------------------------------------------
def _vmem_capacity_bytes() -> int:
    cap = 64 * _MIB                      # conservative fallback (v7x physical)
    try:
        cap = int(pltpu.get_tpu_info().vmem_capacity_bytes)
    except Exception:
        pass
    return min(max(cap, 32 * _MIB), 256 * _MIB)


def _vmem_limit_bytes(cap: int, est_bytes: int) -> int:
    # Fail-safe: derive the limit from the estimated footprint (never below
    # 32 MiB), but leave headroom below the physical capacity.
    return min(int(cap * 3 // 4), max(32 * _MIB, int(est_bytes) + 4 * _MIB))


def _pick_block(nc: int, per_plane_bytes: int, fixed_bytes: int,
                budget_bytes: int, max_unroll: int) -> int:
    """Largest divisor of nc that (a) keeps the estimated VMEM footprint under
    budget, (b) keeps any in-kernel unroll bounded, and (c) leaves >= 4 grid
    steps when possible (>= 2 per TensorCore on v7x megacore), falling back to
    >= 2 steps, then any."""
    avail = budget_bytes - fixed_bytes
    max_b = max(1, avail // max(per_plane_bytes, 1))
    max_b = int(min(max_b, max_unroll, nc))
    divisors = [d for d in range(1, nc + 1) if nc % d == 0 and d <= max_b] or [1]
    for min_steps in (4, 2, 1):
        pref = [d for d in divisors if nc // d >= min_steps]
        if pref:
            return max(pref)
    return 1


# ----------------------------------------------------------------------------
# Kernels.
# ----------------------------------------------------------------------------
def _kron_kernel(x_ref, wf_ref, o_ref):
    # x_ref:  (1, B, H*W)      flattened input planes (lane-dense)
    # wf_ref: (H*W, Ho*Wo)     kron(Wh, Ww)^T
    # o_ref:  (1, B, Ho*Wo)    flattened output planes (lane-dense)
    xb = x_ref[0].astype(wf_ref.dtype)
    out = jnp.dot(xb, wf_ref[...], preferred_element_type=jnp.float32)
    o_ref[0] = out.astype(o_ref.dtype)


def _make_separable_kernel(merge_ok: bool):
    def kernel(x_ref, wh_ref, wwt_ref, o_ref, t2_ref):
        # x_ref:   (B, H, W)        input block (original dtype)
        # wh_ref:  (Ho, H)          height weights
        # wwt_ref: (W, Wo)          width weights, pre-transposed
        # o_ref:   (1, Ho, B*Wo)    lane-dense output slab
        # t2_ref:  (H, B*Wo)        VMEM scratch (relayouted intermediate)
        B, H, W = x_ref.shape
        Wo = wwt_ref.shape[1]
        wwt = wwt_ref[...]
        if merge_ok:
            # Width pass: ONE batched MXU matmul; (B,H,W)->(B*H,W) is a
            # layout-preserving merge because H is sublane-pack aligned.
            xf = x_ref[...].astype(wwt.dtype).reshape(B * H, W)
            t = jnp.dot(xf, wwt, preferred_element_type=jnp.float32)
            t = t.astype(t2_ref.dtype)                     # single hoisted cast
            # Relayout (B*H, Wo) -> (H, B*Wo) with plain static slice stores
            # into VMEM scratch (vst/XLU work only, no extra HBM traffic).
            for b in range(B):
                t2_ref[:, b * Wo:(b + 1) * Wo] = t[b * H:(b + 1) * H, :]
        else:
            # H not sublane-aligned: avoid the merged reshape; per-plane width
            # matmuls written straight into the relayouted scratch.
            for b in range(B):
                tb = jnp.dot(x_ref[b].astype(wwt.dtype), wwt,
                             preferred_element_type=jnp.float32)
                t2_ref[:, b * Wo:(b + 1) * Wo] = tb.astype(t2_ref.dtype)
        # Height pass: ONE batched MXU matmul over all B planes.
        out = jnp.dot(wh_ref[...], t2_ref[...], preferred_element_type=jnp.float32)
        o_ref[0] = out.astype(o_ref.dtype)
    return kernel


# ----------------------------------------------------------------------------
# Wrapper.
# ----------------------------------------------------------------------------
def interpolate_bilinear(x: jnp.ndarray, scale_factor: float = 2.0) -> jnp.ndarray:
    """Equivalent of Interpolate(scale_factor, mode='bilinear') forward.

    x: (N, C, H, W). Returns (N, C, floor(H*sf), floor(W*sf))."""
    N, C, H, W = x.shape
    Ho = int(math.floor(H * scale_factor))
    Wo = int(math.floor(W * scale_factor))
    NC = N * C

    # Keep bf16 operands bf16 (full-rate MXU, half the DMA bytes); else f32.
    w_dtype = jnp.bfloat16 if x.dtype == jnp.bfloat16 else jnp.float32
    itemsize = jnp.dtype(x.dtype).itemsize
    w_itemsize = jnp.dtype(w_dtype).itemsize

    cap = _vmem_capacity_bytes()
    budget = int(cap * 2 // 5)           # ~51 MiB on v5e/v6e, ~25 MiB on v7x

    kron_bytes = H * W * Ho * Wo * w_itemsize
    use_kron = (H * W <= 4096) and (kron_bytes <= _KRON_BYTES_MAX)

    if use_kron:
        # ------------------- small-plane fast path (kron) -------------------
        HW, HoWo = H * W, Ho * Wo
        fixed = 2 * kron_bytes                                   # dbl-buffered
        per_plane = (2 * HW * itemsize + 2 * HoWo * itemsize
                     + HoWo * 4 + HW * w_itemsize)
        B = _pick_block(NC, per_plane, fixed, budget, max_unroll=512)
        limit = _vmem_limit_bytes(cap, fixed + per_plane * B)

        wh = _interp_matrix(H, Ho)
        ww = _interp_matrix(W, Wo)
        wfull = jnp.kron(wh, ww).T.astype(w_dtype)               # (H*W, Ho*Wo)
        x3 = x.reshape(NC // B, B, HW)

        cost = pl.CostEstimate(
            flops=2 * NC * HW * HoWo,
            transcendentals=0,
            bytes_accessed=(NC * HW + NC * HoWo) * itemsize
                           + HW * HoWo * w_itemsize,
        )
        out = pl.pallas_call(
            _kron_kernel,
            out_shape=jax.ShapeDtypeStruct((NC // B, B, HoWo), x.dtype),
            grid=(NC // B,),
            in_specs=[
                pl.BlockSpec((1, B, HW), lambda i: (i, 0, 0)),
                pl.BlockSpec((HW, HoWo), lambda i: (0, 0)),
            ],
            out_specs=pl.BlockSpec((1, B, HoWo), lambda i: (i, 0, 0)),
            compiler_params=pltpu.CompilerParams(
                dimension_semantics=("parallel",),
                vmem_limit_bytes=limit,
            ),
            cost_estimate=cost,
        )(x3, wfull)
        return out.reshape(N, C, Ho, Wo)

    # ------------------- general separable two-matmul path -------------------
    pack = 8 * (4 // itemsize) if itemsize in (1, 2, 4) else 8   # sublane pack
    merge_ok = (H % pack == 0)
    max_unroll = 32 if merge_ok else 8

    fixed = 2 * (Ho * H + W * Wo) * w_itemsize                   # dbl-buffered
    per_plane = (2 * H * W * itemsize + 2 * Ho * Wo * itemsize   # in/out blocks
                 + H * Wo * 4                                    # f32 width result
                 + H * Wo * w_itemsize                           # t2 scratch
                 + Ho * Wo * 4                                   # f32 height result
                 + H * W * w_itemsize)                           # input cast
    B = _pick_block(NC, per_plane, fixed, budget, max_unroll=max_unroll)
    limit = _vmem_limit_bytes(cap, fixed + per_plane * B)
    # TODO(synk): if fixed + per_plane exceeds the physical limit for huge
    # images, tile H_out across an extra grid axis instead of failing.

    wh = _interp_matrix(H, Ho).astype(w_dtype)                   # (Ho, H)
    wwt = _interp_matrix(W, Wo).T.astype(w_dtype)                # (W, Wo)
    xf = x.reshape(NC, H, W)

    cost = pl.CostEstimate(
        flops=2 * NC * (H * W * Wo + H * Ho * Wo),
        transcendentals=0,
        bytes_accessed=(xf.size + NC * Ho * Wo) * itemsize
                       + (wh.size + wwt.size) * w_itemsize,
    )
    out = pl.pallas_call(
        _make_separable_kernel(merge_ok),
        out_shape=jax.ShapeDtypeStruct((NC // B, Ho, B * Wo), x.dtype),
        grid=(NC // B,),
        in_specs=[
            pl.BlockSpec((B, H, W), lambda i: (i, 0, 0)),
            pl.BlockSpec((Ho, H), lambda i: (0, 0)),
            pl.BlockSpec((W, Wo), lambda i: (0, 0)),
        ],
        out_specs=pl.BlockSpec((1, Ho, B * Wo), lambda i: (i, 0, 0)),
        scratch_shapes=[pltpu.VMEM((H, B * Wo), w_dtype)],
        compiler_params=pltpu.CompilerParams(
            dimension_semantics=("parallel",),
            vmem_limit_bytes=limit,
        ),
        cost_estimate=cost,
    )(xf, wh, wwt)

    # Un-merge the lane-dense (Ho, B*Wo) slabs back to (N, C, Ho, Wo).
    out = out.reshape(NC // B, Ho, B, Wo).transpose(0, 2, 1, 3)
    return out.reshape(N, C, Ho, Wo)


if __name__ == "__main__":
    # 1) Small NCHW input (exercises the kron fast path: 16x16 -> 32x32).
    x1 = jax.random.normal(jax.random.PRNGKey(0), (2, 4, 16, 16), dtype=jnp.float32)
    y1 = jax.block_until_ready(interpolate_bilinear(x1, scale_factor=2.0))
    assert y1.shape == (2, 4, 32, 32), y1.shape
    wh1 = _interp_matrix(16, 32)
    ww1 = _interp_matrix(16, 32)
    ref1 = jnp.einsum("oh,nchw,pw->ncop", wh1, x1, ww1)
    err1 = float(jnp.max(jnp.abs(y1 - ref1)))
    assert err1 < 1e-4, err1

    # 2) Wider input (exercises the general batched two-matmul path).
    x2 = jax.random.normal(jax.random.PRNGKey(1), (2, 4, 32, 128), dtype=jnp.float32)
    y2 = jax.block_until_ready(interpolate_bilinear(x2, scale_factor=2.0))
    assert y2.shape == (2, 4, 64, 256), y2.shape
    wh2 = _interp_matrix(32, 64)
    ww2 = _interp_matrix(128, 256)
    ref2 = jnp.einsum("oh,nchw,pw->ncop", wh2, x2, ww2)
    err2 = float(jnp.max(jnp.abs(y2 - ref2)))
    assert err2 < 1e-4, err2

    print("KERNEL_OK")
</pallas_src>

<mosaic_0001>
module attributes {stable_mosaic.version = 11 : i64} {
  func.func @_kron_kernel(%arg0: i32, %arg1: memref<1x2x256xf32, #tpu.memory_space<vmem>>, %arg2: memref<256x1024xf32, #tpu.memory_space<vmem>>, %arg3: memref<1x2x1024xf32, #tpu.memory_space<vmem>>) attributes {dimension_semantics = [#tpu.dimension_semantics<parallel>], iteration_bounds = array<i64: 4>, scalar_prefetch = 0 : i64, scratch_operands = 0 : i64, tpu.core_type = #tpu.core_type<tc>, window_params = [{transform_indices = @transform_0, window_bounds = array<i64: 1, 2, 256>}, {pipeline_mode = #tpu.pipeline_mode<synchronous>, transform_indices = @transform_1, window_bounds = array<i64: 256, 1024>}, {transform_indices = @transform_2, window_bounds = array<i64: 1, 2, 1024>}]} {
    %c0 = arith.constant 0 : index
    %c0_0 = arith.constant 0 : index
    %c0_1 = arith.constant 0 : index
    %0 = vector.load %arg1[%c0, %c0_0, %c0_1] : memref<1x2x256xf32, #tpu.memory_space<vmem>>, vector<1x2x256xf32>
    %1 = vector.shape_cast %0 : vector<1x2x256xf32> to vector<2x256xf32>
    %c0_2 = arith.constant 0 : index
    %c0_3 = arith.constant 0 : index
    %2 = vector.load %arg2[%c0_2, %c0_3] : memref<256x1024xf32, #tpu.memory_space<vmem>>, vector<256x1024xf32>
    %cst = arith.constant dense<0.000000e+00> : vector<2x1024xf32>
    %3 = tpu.matmul %1, %2, %cst {dimension_numbers = #tpu.dot_dimension_numbers<[1], [0], [0], [1], [0, 0, 1, 1], [], []>} : vector<2x256xf32>, vector<256x1024xf32>, vector<2x1024xf32> -> vector<2x1024xf32>
    %c0_4 = arith.constant 0 : index
    %c0_5 = arith.constant 0 : index
    %c0_6 = arith.constant 0 : index
    %4 = vector.load %arg3[%c0_4, %c0_5, %c0_6] : memref<1x2x1024xf32, #tpu.memory_space<vmem>>, vector<1x2x1024xf32>
    %5 = vector.shape_cast %4 : vector<1x2x1024xf32> to vector<2x1024xf32>
    %6 = vector.shape_cast %3 : vector<2x1024xf32> to vector<1x2x1024xf32>
    tpu.vector_store %arg3[%c0_4, %c0_5, %c0_6], %6 {strides = array<i32>} : memref<1x2x1024xf32, #tpu.memory_space<vmem>>, vector<1x2x1024xf32>,
    return
  }
  func.func @transform_0(%arg0: i32) -> (i32, i32, i32) {
    %c0_i32 = arith.constant 0 : i32
    %c0_i32_0 = arith.constant 0 : i32
    %c0_i32_1 = arith.constant 0 : i32
    return %arg0, %c0_i32, %c0_i32_0 : i32, i32, i32
  }
  func.func @transform_1(%arg0: i32) -> (i32, i32) {
    %c0_i32 = arith.constant 0 : i32
    %c0_i32_0 = arith.constant 0 : i32
    %c0_i32_1 = arith.constant 0 : i32
    return %c0_i32, %c0_i32_0 : i32, i32
  }
  func.func @transform_2(%arg0: i32) -> (i32, i32, i32) {
    %c0_i32 = arith.constant 0 : i32
    %c0_i32_0 = arith.constant 0 : i32
    %c0_i32_1 = arith.constant 0 : i32
    return %arg0, %c0_i32, %c0_i32_0 : i32, i32, i32
  }
}

</mosaic_0001>

<llo_original>
// kernel: tpu_custom_call.1
$region0: #{tpu_custom_call.1}
  #allocation0 [shape = 'u32[]', space=smem, size = 0x4, offset = 0x4, fixed_abs, tag = 'smem constant byte address 0x4 - core index']
  #allocation1 [shape = 'u32[72,128]{1,0:T(1,128)}', space=vmem, size = 0x9000, scoped, tag = 'internal scratch']
  %s0 = inlined_call_operand.hbm [shape: f32[4,2,256], index: 0, kind: input, shape index: {}]
  %s1 = inlined_call_operand.hbm [shape: f32[256,1024], index: 1, kind: input, shape index: {}]
  %s2 = inlined_call_operand.hbm [shape: f32[4,2,1024], index: 2, kind: output, shape index: {}]
  %s3 = sld [smem:[#allocation0]]
  $region49: #{tpu_custom_call.1} parent=0
    _
  %s5 = ssub.s32 1, %s3
  %s6 = scalar_select 0, %s5, %s3
  $region1: #{tpu_custom_call.1} parent=0
    #allocation2 [shape = 'u8[4096]{0}', space=vmem, size = 0x1000, scoped, tag = 'input window, operand 0']
    #allocation3 [shape = 's32[2]{0}', space=sflag, size = 0x8, scoped, tag = 'scoped memory for tpu_custom_call.1']
    #allocation4 [shape = 's32[2]{0}', space=sflag, size = 0x8, scoped, tag = 'scoped memory for tpu_custom_call.1']
    #allocation5 [shape = 'u8[1048576]{0}', space=vmem, size = 0x100000, scoped, tag = 'input window, operand 1, single buffered']
    #allocation6 [shape = 's32[1]{0}', space=sflag, size = 0x4, scoped, tag = 'scoped memory for tpu_custom_call.1']
    #allocation7 [shape = 'u8[16384]{0}', space=vmem, size = 0x4000, scoped, tag = 'output window, operand 0']
    %7 = vsyncpa [#allocation3], 0
    %s8 = scalar_lea.sflag [#allocation3], 1
    %9 = vsyncpa %s8, 0
    %10 = vsyncpa [#allocation6], 0
    %11 = vsyncpa [#allocation4], 0
    %s12 = scalar_lea.sflag [#allocation4], 1
    %13 = vsyncpa %s12, 0
    loop: start=0, step=1, limit=6
    $region2: #{tpu_custom_call.1} parent=1 // loop_pre_header
      _
    $region3: #{tpu_custom_call.1} parent=1 // loop_header
      %s15 = sphi 0, %s19
      %p16 = scmp.ge.s32.totalorder %s15, 6
      %s25 = sphi 0, %s27
      %s28 = sphi 0, %s25
      %s29 = sphi 0, %s28
      %s45 = sphi 0, %s29
      %s49 = sphi 0, %s49
      %s51 = sphi 0, %s49
      %s52 = sphi 0, %s51
      %s66 = sphi 0, %s52
      %s72 = sphi 0, %s74
      %s75 = sphi 0, %s72
      %s76 = sphi 0, %s75
      %s92 = sphi 0, %s76
    $region4: #{tpu_custom_call.1} parent=1 // loop_header_branch
      %18 = sbr.rel (%p16) target = $region8
    $region5: #{tpu_custom_call.1} parent=1 // loop_body
      %s20 = ssub.s32 %s15, 1
      %s21 = ssub.s32 %s15, 2
      %s22 = sadd.s32 %s15, 1
      %s23 = ssub.s32 %s15, %s22
      %p24 = scmp.eq.s32.totalorder %s23, 0
      %s26 = sadd.s32 %s25, 1
      %s27 = scalar_select %p24, %s25, %s26
      %p30 = pneg %p24
      %p31 = scmp.eq.s32.totalorder %s15, 3
      %p32 = por %p30, %p31
      %p33 = scmp.ne.s32.totalorder %s25, %s28
      %p34 = scmp.eq.s32.totalorder %s15, 0
      %p35 = por %p33, %p34
      %p36 = scmp.ne.s32.totalorder %s25, %s28
      %p37 = scmp.eq.s32.totalorder %s20, 3
      %p38 = por %p36, %p37
      %p39 = scmp.ne.s32.totalorder %s28, %s29
      %p40 = scmp.eq.s32.totalorder %s20, 0
      %p41 = por %p39, %p40
      %p42 = scmp.ne.s32.totalorder %s28, %s29
      %p43 = scmp.eq.s32.totalorder %s21, 3
      %p44 = por %p42, %p43
      %p46 = scmp.ne.s32.totalorder %s29, %s45
      %p47 = scmp.eq.s32.totalorder %s21, 0
      %p48 = por %p46, %p47
      %s50 = sadd.s32 %s49, 1
      %p53 = scmp.eq.s32.totalorder %s15, 3
      %p54 = scmp.ne.s32.totalorder %s49, %s51
      %p55 = scmp.eq.s32.totalorder %s15, 0
      %p56 = por %p54, %p55
      %p57 = scmp.ne.s32.totalorder %s49, %s51
      %p58 = scmp.eq.s32.totalorder %s20, 3
      %p59 = por %p57, %p58
      %p60 = scmp.ne.s32.totalorder %s51, %s52
      %p61 = scmp.eq.s32.totalorder %s20, 0
      %p62 = por %p60, %p61
      %p63 = scmp.ne.s32.totalorder %s51, %s52
      %p64 = scmp.eq.s32.totalorder %s21, 3
      %p65 = por %p63, %p64
      %p67 = scmp.ne.s32.totalorder %s52, %s66
      %p68 = scmp.eq.s32.totalorder %s21, 0
      %p69 = por %p67, %p68
      %s70 = ssub.s32 %s15, %s22
      %p71 = scmp.eq.s32.totalorder %s70, 0
      %s73 = sadd.s32 %s72, 1
      %s74 = scalar_select %p71, %s72, %s73
      %p77 = pneg %p71
      %p78 = scmp.eq.s32.totalorder %s15, 3
      %p79 = por %p77, %p78
      %p80 = scmp.ne.s32.totalorder %s72, %s75
      %p81 = scmp.eq.s32.totalorder %s15, 0
      %p82 = por %p80, %p81
      %p83 = scmp.ne.s32.totalorder %s72, %s75
      %p84 = scmp.eq.s32.totalorder %s20, 3
      %p85 = por %p83, %p84
      %p86 = scmp.ne.s32.totalorder %s75, %s76
      %p87 = scmp.eq.s32.totalorder %s20, 0
      %p88 = por %p86, %p87
      %p89 = scmp.ne.s32.totalorder %s75, %s76
      %p90 = scmp.eq.s32.totalorder %s21, 3
      %p91 = por %p89, %p90
      %p93 = scmp.ne.s32.totalorder %s76, %s92
      %p94 = scmp.eq.s32.totalorder %s21, 0
      %p95 = por %p93, %p94
      %p96 = scmp.le.s32.totalorder 1, %s15
      %p97 = scmp.lt.s32.totalorder %s15, 5
      %p98 = pnand %p96, %p97
      %p99 = pneg %p98
      // Predicated region
      $region9: #{tpu_custom_call.1} parent=5 // pred_check
        _
      $region10: #{tpu_custom_call.1} parent=5 // pred_check_branch
        %101 = sbr.rel (%p98) target = $region12
      $region11: #{tpu_custom_call.1} parent=5 // pred_region
        %s102 = ssub.s32 %s15, 1
        // Predicated region
        $region13: #{tpu_custom_call.1} parent=11 // pred_check
          %p103 = pneg %p62
        $region14: #{tpu_custom_call.1} parent=11 // pred_check_branch
          %105 = sbr.rel (%p103) target = $region16
        $region15: #{tpu_custom_call.1} parent=11 // pred_region
          %107 = vsyncadd [#allocation6], 0
          %s108 = sshll.u32 %s1, 4
          %s109 = int_to_ptr.hbm [resolvable:$true] %s108
          %s110 = sshll.u32 [#allocation5], 4
          %s111 = int_to_ptr.vmem [resolvable:$true] %s110
          %116 = dma.hbm_to_vmem [thread:$0]  %s109, 32768, %s111, [#allocation6], 1024, 1024, 64
        $region16: #{tpu_custom_call.1} parent=11 // pred_fallthru
          _
      $region12: #{tpu_custom_call.1} parent=5 // pred_fallthru
        _
      %p117 = scmp.lt.s32.totalorder %s15, 4
      // Predicated region
      $region17: #{tpu_custom_call.1} parent=5 // pred_check
        %p118 = pneg %p117
      $region18: #{tpu_custom_call.1} parent=5 // pred_check_branch
        %120 = sbr.rel (%p118) target = $region20
      $region19: #{tpu_custom_call.1} parent=5 // pred_region
        // Predicated region
        $region21: #{tpu_custom_call.1} parent=19 // pred_check
          %p121 = pneg %p35
        $region22: #{tpu_custom_call.1} parent=19 // pred_check_branch
          %123 = sbr.rel (%p121) target = $region24
        $region23: #{tpu_custom_call.1} parent=19 // pred_region
          %s124 = sand.u32 %s25, 1
          %s125 = scalar_lea.sflag [#allocation3], %s124
          %s126 = sand.u32 %s25, 1
          %s127 = smul.addr %s126, 4
          %s128 = scalar_lea.vmem [#allocation2], %s127
          %130 = vsyncadd %s125, 0
          %s131 = smul.addr %s15, 2
          %s132 = smul.addr %s131, 2
          %s133 = scalar_lea.hbm %s0, %s132
          %s135 = sshll.u32 %s133, 4
          %s136 = int_to_ptr.hbm [resolvable:$true] %s135
          %s137 = sshll.u32 %s128, 4
          %s138 = int_to_ptr.vmem [resolvable:$true] %s137
          %140 = dma.hbm_to_vmem [thread:$0]  %s136, 64, %s138, %s125
        $region24: #{tpu_custom_call.1} parent=19 // pred_fallthru
          _
      $region20: #{tpu_custom_call.1} parent=5 // pred_fallthru
        _
      %p141 = scmp.le.s32.totalorder 1, %s15
      %p142 = scmp.lt.s32.totalorder %s15, 5
      %p143 = pnand %p141, %p142
      %p144 = pneg %p143
      // Predicated region
      $region25: #{tpu_custom_call.1} parent=5 // pred_check
        _
      $region26: #{tpu_custom_call.1} parent=5 // pred_check_branch
        %146 = sbr.rel (%p143) target = $region28
      $region27: #{tpu_custom_call.1} parent=5 // pred_region
        %s147 = ssub.s32 %s15, 1
        %s148 = sand.u32 %s28, 1
        %s149 = scalar_lea.sflag [#allocation3], %s148
        %s150 = sand.u32 %s28, 1
        %s151 = smul.addr %s150, 4
        %s152 = scalar_lea.vmem [#allocation2], %s151
        // Predicated region
        $region29: #{tpu_custom_call.1} parent=27 // pred_check
          %p153 = pneg %p41
        $region30: #{tpu_custom_call.1} parent=27 // pred_check_branch
          %155 = sbr.rel (%p153) target = $region32
        $region31: #{tpu_custom_call.1} parent=27 // pred_region
          %157 = dma.done %s149, 64
        $region32: #{tpu_custom_call.1} parent=27 // pred_fallthru
          _
        // Predicated region
        $region33: #{tpu_custom_call.1} parent=27 // pred_check
          %p158 = pneg %p62
        $region34: #{tpu_custom_call.1} parent=27 // pred_check_branch
          %160 = sbr.rel (%p158) target = $region36
        $region35: #{tpu_custom_call.1} parent=27 // pred_region
          %162 = dma.done [#allocation6], 32768
        $region36: #{tpu_custom_call.1} parent=27 // pred_fallthru
          _
        %s163 = sand.u32 %s28, 1
        %s164 = scalar_lea.sflag [#allocation3], %s163
        %s165 = sand.u32 %s28, 1
        %s166 = smul.addr %s165, 4
        %s167 = scalar_lea.vmem [#allocation2], %s166
        %p168 = pneg %p41
        %p169 = pneg %p38
        %p170 = pneg %p62
        %p171 = pneg %p59
        %p172 = pneg %p88
        %p173 = pneg %p85
        %s174 = sand.u32 %s75, 1
        %s175 = scalar_lea.sflag [#allocation4], %s174
        %s176 = sand.u32 %s75, 1
        %s177 = smul.addr %s176, 16
        %s178 = scalar_lea.vmem [#allocation7], %s177
        %v179 = vld [vmem:[%s152] sm:$0xf]
        %v180 = vld [vmem:[#allocation5] sm:$0xff]
        %v181 = vld [vmem:[#allocation5 + $0x8] sm:$0xff]
        %v182 = vld [vmem:[#allocation5 + $0x10] sm:$0xff]
        %v183 = vld [vmem:[#allocation5 + $0x18] sm:$0xff]
        %v184 = vld [vmem:[#allocation5 + $0x20] sm:$0xff]
        %v185 = vld [vmem:[#allocation5 + $0x28] sm:$0xff]
        %v186 = vld [vmem:[#allocation5 + $0x30] sm:$0xff]
        %v187 = vld [vmem:[#allocation5 + $0x38] sm:$0xff]
        %v188 = vld [vmem:[#allocation5 + $0x40] sm:$0xff]
        %v189 = vld [vmem:[#allocation5 + $0x48] sm:$0xff]
        %v190 = vld [vmem:[#allocation5 + $0x50] sm:$0xff]
        %v191 = vld [vmem:[#allocation5 + $0x58] sm:$0xff]
        %v192 = vld [vmem:[#allocation5 + $0x60] sm:$0xff]
        %v193 = vld [vmem:[#allocation5 + $0x68] sm:$0xff]
        %v194 = vld [vmem:[#allocation5 + $0x70] sm:$0xff]
        %v195 = vld [vmem:[#allocation5 + $0x78] sm:$0xff]
        %v196 = vld [vmem:[#allocation5 + $0x80] sm:$0xff]
        %v197 = vld [vmem:[#allocation5 + $0x88] sm:$0xff]
        %v198 = vld [vmem:[#allocation5 + $0x90] sm:$0xff]
        %v199 = vld [vmem:[#allocation5 + $0x98] sm:$0xff]
        %v200 = vld [vmem:[#allocation5 + $0xa0] sm:$0xff]
        %v201 = vld [vmem:[#allocation5 + $0xa8] sm:$0xff]
        %v202 = vld [vmem:[#allocation5 + $0xb0] sm:$0xff]
        %v203 = vld [vmem:[#allocation5 + $0xb8] sm:$0xff]
        %v204 = vld [vmem:[#allocation5 + $0xc0] sm:$0xff]
        %v205 = vld [vmem:[#allocation5 + $0xc8] sm:$0xff]
        %v206 = vld [vmem:[#allocation5 + $0xd0] sm:$0xff]
        %v207 = vld [vmem:[#allocation5 + $0xd8] sm:$0xff]
        %v208 = vld [vmem:[#allocation5 + $0xe0] sm:$0xff]
        %v209 = vld [vmem:[#allocation5 + $0xe8] sm:$0xff]
        %v210 = vld [vmem:[#allocation5 + $0xf0] sm:$0xff]
        %v211 = vld [vmem:[#allocation5 + $0xf8] sm:$0xff]
        %v212 = vld [vmem:[#allocation5 + $0x100] sm:$0xff]
        %v213 = vld [vmem:[#allocation5 + $0x108] sm:$0xff]
        %v214 = vld [vmem:[#allocation5 + $0x110] sm:$0xff]
        %v215 = vld [vmem:[#allocation5 + $0x118] sm:$0xff]
        %v216 = vld [vmem:[#allocation5 + $0x120] sm:$0xff]
        %v217 = vld [vmem:[#allocation5 + $0x128] sm:$0xff]
        %v218 = vld [vmem:[#allocation5 + $0x130] sm:$0xff]
        %v219 = vld [vmem:[#allocation5 + $0x138] sm:$0xff]
        %v220 = vld [vmem:[#allocation5 + $0x140] sm:$0xff]
        %v221 = vld [vmem:[#allocation5 + $0x148] sm:$0xff]
        %v222 = vld [vmem:[#allocation5 + $0x150] sm:$0xff]
        %v223 = vld [vmem:[#allocation5 + $0x158] sm:$0xff]
        %v224 = vld [vmem:[#allocation5 + $0x160] sm:$0xff]
        %v225 = vld [vmem:[#allocation5 + $0x168] sm:$0xff]
        %v226 = vld [vmem:[#allocation5 + $0x170] sm:$0xff]
        %v227 = vld [vmem:[#allocation5 + $0x178] sm:$0xff]
        %v228 = vld [vmem:[#allocation5 + $0x180] sm:$0xff]
        %v229 = vld [vmem:[#allocation5 + $0x188] sm:$0xff]
        %v230 = vld [vmem:[#allocation5 + $0x190] sm:$0xff]
        %v231 = vld [vmem:[#allocation5 + $0x198] sm:$0xff]
        %v232 = vld [vmem:[#allocation5 + $0x1a0] sm:$0xff]
        %v233 = vld [vmem:[#allocation5 + $0x1a8] sm:$0xff]
        %v234 = vld [vmem:[#allocation5 + $0x1b0] sm:$0xff]
        %v235 = vld [vmem:[#allocation5 + $0x1b8] sm:$0xff]
        %v236 = vld [vmem:[#allocation5 + $0x1c0] sm:$0xff]
        %v237 = vld [vmem:[#allocation5 + $0x1c8] sm:$0xff]
        %v238 = vld [vmem:[#allocation5 + $0x1d0] sm:$0xff]
        %v239 = vld [vmem:[#allocation5 + $0x1d8] sm:$0xff]
        %v240 = vld [vmem:[#allocation5 + $0x1e0] sm:$0xff]
        %v241 = vld [vmem:[#allocation5 + $0x1e8] sm:$0xff]
        %v242 = vld [vmem:[#allocation5 + $0x1f0] sm:$0xff]
        %v243 = vld [vmem:[#allocation5 + $0x1f8] sm:$0xff]
        %v244 = vld [vmem:[#allocation5 + $0x200] sm:$0xff]
        %v245 = vld [vmem:[#allocation5 + $0x208] sm:$0xff]
        %v246 = vld [vmem:[#allocation5 + $0x210] sm:$0xff]
        %v247 = vld [vmem:[#allocation5 + $0x218] sm:$0xff]
        %v248 = vld [vmem:[#allocation5 + $0x220] sm:$0xff]
        %v249 = vld [vmem:[#allocation5 + $0x228] sm:$0xff]
        %v250 = vld [vmem:[#allocation5 + $0x230] sm:$0xff]
        %v251 = vld [vmem:[#allocation5 + $0x238] sm:$0xff]
        %v252 = vld [vmem:[#allocation5 + $0x240] sm:$0xff]
        %v253 = vld [vmem:[#allocation5 + $0x248] sm:$0xff]
        %v254 = vld [vmem:[#allocation5 + $0x250] sm:$0xff]
        %v255 = vld [vmem:[#allocation5 + $0x258] sm:$0xff]
        %v256 = vld [vmem:[#allocation5 + $0x260] sm:$0xff]
        %v257 = vld [vmem:[#allocation5 + $0x268] sm:$0xff]
        %v258 = vld [vmem:[#allocation5 + $0x270] sm:$0xff]
        %v259 = vld [vmem:[#allocation5 + $0x278] sm:$0xff]
        %v260 = vld [vmem:[#allocation5 + $0x280] sm:$0xff]
        %v261 = vld [vmem:[#allocation5 + $0x288] sm:$0xff]
        %v262 = vld [vmem:[#allocation5 + $0x290] sm:$0xff]
        %v263 = vld [vmem:[#allocation5 + $0x298] sm:$0xff]
        %v264 = vld [vmem:[#allocation5 + $0x2a0] sm:$0xff]
        %v265 = vld [vmem:[#allocation5 + $0x2a8] sm:$0xff]
        %v266 = vld [vmem:[#allocation5 + $0x2b0] sm:$0xff]
        %v267 = vld [vmem:[#allocation5 + $0x2b8] sm:$0xff]
        %v268 = vld [vmem:[#allocation5 + $0x2c0] sm:$0xff]
        %v269 = vld [vmem:[#allocation5 + $0x2c8] sm:$0xff]
        %v270 = vld [vmem:[#allocation5 + $0x2d0] sm:$0xff]
        %v271 = vld [vmem:[#allocation5 + $0x2d8] sm:$0xff]
        %v272 = vld [vmem:[#allocation5 + $0x2e0] sm:$0xff]
        %v273 = vld [vmem:[#allocation5 + $0x2e8] sm:$0xff]
        %v274 = vld [vmem:[#allocation5 + $0x2f0] sm:$0xff]
        %v275 = vld [vmem:[#allocation5 + $0x2f8] sm:$0xff]
        %v276 = vld [vmem:[#allocation5 + $0x300] sm:$0xff]
        %v277 = vld [vmem:[#allocation5 + $0x308] sm:$0xff]
        %v278 = vld [vmem:[#allocation5 + $0x310] sm:$0xff]
        %v279 = vld [vmem:[#allocation5 + $0x318] sm:$0xff]
        %v280 = vld [vmem:[#allocation5 + $0x320] sm:$0xff]
        %v281 = vld [vmem:[#allocation5 + $0x328] sm:$0xff]
        %v282 = vld [vmem:[#allocation5 + $0x330] sm:$0xff]
        %v283 = vld [vmem:[#allocation5 + $0x338] sm:$0xff]
        %v284 = vld [vmem:[#allocation5 + $0x340] sm:$0xff]
        %v285 = vld [vmem:[#allocation5 + $0x348] sm:$0xff]
        %v286 = vld [vmem:[#allocation5 + $0x350] sm:$0xff]
        %v287 = vld [vmem:[#allocation5 + $0x358] sm:$0xff]
        %v288 = vld [vmem:[#allocation5 + $0x360] sm:$0xff]
        %v289 = vld [vmem:[#allocation5 + $0x368] sm:$0xff]
        %v290 = vld [vmem:[#allocation5 + $0x370] sm:$0xff]
        %v291 = vld [vmem:[#allocation5 + $0x378] sm:$0xff]
        %v292 = vld [vmem:[#allocation5 + $0x380] sm:$0xff]
        %v293 = vld [vmem:[#allocation5 + $0x388] sm:$0xff]
        %v294 = vld [vmem:[#allocation5 + $0x390] sm:$0xff]
        %v295 = vld [vmem:[#allocation5 + $0x398] sm:$0xff]
        %v296 = vld [vmem:[#allocation5 + $0x3a0] sm:$0xff]
        %v297 = vld [vmem:[#allocation5 + $0x3a8] sm:$0xff]
        %v298 = vld [vmem:[#allocation5 + $0x3b0] sm:$0xff]
        %v299 = vld [vmem:[#allocation5 + $0x3b8] sm:$0xff]
        %v300 = vld [vmem:[#allocation5 + $0x3c0] sm:$0xff]
        %v301 = vld [vmem:[#allocation5 + $0x3c8] sm:$0xff]
        %v302 = vld [vmem:[#allocation5 + $0x3d0] sm:$0xff]
        %v303 = vld [vmem:[#allocation5 + $0x3d8] sm:$0xff]
        %v304 = vld [vmem:[#allocation5 + $0x3e0] sm:$0xff]
        %v305 = vld [vmem:[#allocation5 + $0x3e8] sm:$0xff]
        %v306 = vld [vmem:[#allocation5 + $0x3f0] sm:$0xff]
        %v307 = vld [vmem:[#allocation5 + $0x3f8] sm:$0xff]
        %v308 = vld [vmem:[#allocation5 + $0x400] sm:$0xff]
        %v309 = vld [vmem:[#allocation5 + $0x408] sm:$0xff]
        %v310 = vld [vmem:[#allocation5 + $0x410] sm:$0xff]
        %v311 = vld [vmem:[#allocation5 + $0x418] sm:$0xff]
        %v312 = vld [vmem:[#allocation5 + $0x420] sm:$0xff]
        %v313 = vld [vmem:[#allocation5 + $0x428] sm:$0xff]
        %v314 = vld [vmem:[#allocation5 + $0x430] sm:$0xff]
        %v315 = vld [vmem:[#allocation5 + $0x438] sm:$0xff]
        %v316 = vld [vmem:[#allocation5 + $0x440] sm:$0xff]
        %v317 = vld [vmem:[#allocation5 + $0x448] sm:$0xff]
        %v318 = vld [vmem:[#allocation5 + $0x450] sm:$0xff]
        %v319 = vld [vmem:[#allocation5 + $0x458] sm:$0xff]
        %v320 = vld [vmem:[#allocation5 + $0x460] sm:$0xff]
        %v321 = vld [vmem:[#allocation5 + $0x468] sm:$0xff]
        %v322 = vld [vmem:[#allocation5 + $0x470] sm:$0xff]
        %v323 = vld [vmem:[#allocation5 + $0x478] sm:$0xff]
        %v324 = vld [vmem:[#allocation5 + $0x480] sm:$0xff]
        %v325 = vld [vmem:[#allocation5 + $0x488] sm:$0xff]
        %v326 = vld [vmem:[#allocation5 + $0x490] sm:$0xff]
        %v327 = vld [vmem:[#allocation5 + $0x498] sm:$0xff]
        %v328 = vld [vmem:[#allocation5 + $0x4a0] sm:$0xff]
        %v329 = vld [vmem:[#allocation5 + $0x4a8] sm:$0xff]
        %v330 = vld [vmem:[#allocation5 + $0x4b0] sm:$0xff]
        %v331 = vld [vmem:[#allocation5 + $0x4b8] sm:$0xff]
        %v332 = vld [vmem:[#allocation5 + $0x4c0] sm:$0xff]
        %v333 = vld [vmem:[#allocation5 + $0x4c8] sm:$0xff]
        %v334 = vld [vmem:[#allocation5 + $0x4d0] sm:$0xff]
        %v335 = vld [vmem:[#allocation5 + $0x4d8] sm:$0xff]
        %v336 = vld [vmem:[#allocation5 + $0x4e0] sm:$0xff]
        %v337 = vld [vmem:[#allocation5 + $0x4e8] sm:$0xff]
        %v338 = vld [vmem:[#allocation5 + $0x4f0] sm:$0xff]
        %v339 = vld [vmem:[#allocation5 + $0x4f8] sm:$0xff]
        %v340 = vld [vmem:[#allocation5 + $0x500] sm:$0xff]
        %v341 = vld [vmem:[#allocation5 + $0x508] sm:$0xff]
        %v342 = vld [vmem:[#allocation5 + $0x510] sm:$0xff]
        %v343 = vld [vmem:[#allocation5 + $0x518] sm:$0xff]
        %v344 = vld [vmem:[#allocation5 + $0x520] sm:$0xff]
        %v345 = vld [vmem:[#allocation5 + $0x528] sm:$0xff]
        %v346 = vld [vmem:[#allocation5 + $0x530] sm:$0xff]
        %v347 = vld [vmem:[#allocation5 + $0x538] sm:$0xff]
        %v348 = vld [vmem:[#allocation5 + $0x540] sm:$0xff]
        %v349 = vld [vmem:[#allocation5 + $0x548] sm:$0xff]
        %v350 = vld [vmem:[#allocation5 + $0x550] sm:$0xff]
        %v351 = vld [vmem:[#allocation5 + $0x558] sm:$0xff]
        %v352 = vld [vmem:[#allocation5 + $0x560] sm:$0xff]
        %v353 = vld [vmem:[#allocation5 + $0x568] sm:$0xff]
        %v354 = vld [vmem:[#allocation5 + $0x570] sm:$0xff]
        %v355 = vld [vmem:[#allocation5 + $0x578] sm:$0xff]
        %v356 = vld [vmem:[#allocation5 + $0x580] sm:$0xff]
        %v357 = vld [vmem:[#allocation5 + $0x588] sm:$0xff]
        %v358 = vld [vmem:[#allocation5 + $0x590] sm:$0xff]
        %v359 = vld [vmem:[#allocation5 + $0x598] sm:$0xff]
        %v360 = vld [vmem:[#allocation5 + $0x5a0] sm:$0xff]
        %v361 = vld [vmem:[#allocation5 + $0x5a8] sm:$0xff]
        %v362 = vld [vmem:[#allocation5 + $0x5b0] sm:$0xff]
        %v363 = vld [vmem:[#allocation5 + $0x5b8] sm:$0xff]
        %v364 = vld [vmem:[#allocation5 + $0x5c0] sm:$0xff]
        %v365 = vld [vmem:[#allocation5 + $0x5c8] sm:$0xff]
        %v366 = vld [vmem:[#allocation5 + $0x5d0] sm:$0xff]
        %v367 = vld [vmem:[#allocation5 + $0x5d8] sm:$0xff]
        %v368 = vld [vmem:[#allocation5 + $0x5e0] sm:$0xff]
        %v369 = vld [vmem:[#allocation5 + $0x5e8] sm:$0xff]
        %v370 = vld [vmem:[#allocation5 + $0x5f0] sm:$0xff]
        %v371 = vld [vmem:[#allocation5 + $0x5f8] sm:$0xff]
        %v372 = vld [vmem:[#allocation5 + $0x600] sm:$0xff]
        %v373 = vld [vmem:[#allocation5 + $0x608] sm:$0xff]
        %v374 = vld [vmem:[#allocation5 + $0x610] sm:$0xff]
        %v375 = vld [vmem:[#allocation5 + $0x618] sm:$0xff]
        %v376 = vld [vmem:[#allocation5 + $0x620] sm:$0xff]
        %v377 = vld [vmem:[#allocation5 + $0x628] sm:$0xff]
        %v378 = vld [vmem:[#allocation5 + $0x630] sm:$0xff]
        %v379 = vld [vmem:[#allocation5 + $0x638] sm:$0xff]
        %v380 = vld [vmem:[#allocation5 + $0x640] sm:$0xff]
        %v381 = vld [vmem:[#allocation5 + $0x648] sm:$0xff]
        %v382 = vld [vmem:[#allocation5 + $0x650] sm:$0xff]
        %v383 = vld [vmem:[#allocation5 + $0x658] sm:$0xff]
        %v384 = vld [vmem:[#allocation5 + $0x660] sm:$0xff]
        %v385 = vld [vmem:[#allocation5 + $0x668] sm:$0xff]
        %v386 = vld [vmem:[#allocation5 + $0x670] sm:$0xff]
        %v387 = vld [vmem:[#allocation5 + $0x678] sm:$0xff]
        %v388 = vld [vmem:[#allocation5 + $0x680] sm:$0xff]
        %v389 = vld [vmem:[#allocation5 + $0x688] sm:$0xff]
        %v390 = vld [vmem:[#allocation5 + $0x690] sm:$0xff]
        %v391 = vld [vmem:[#allocation5 + $0x698] sm:$0xff]
        %v392 = vld [vmem:[#allocation5 + $0x6a0] sm:$0xff]
        %v393 = vld [vmem:[#allocation5 + $0x6a8] sm:$0xff]
        %v394 = vld [vmem:[#allocation5 + $0x6b0] sm:$0xff]
        %v395 = vld [vmem:[#allocation5 + $0x6b8] sm:$0xff]
        %v396 = vld [vmem:[#allocation5 + $0x6c0] sm:$0xff]
        %v397 = vld [vmem:[#allocation5 + $0x6c8] sm:$0xff]
        %v398 = vld [vmem:[#allocation5 + $0x6d0] sm:$0xff]
        %v399 = vld [vmem:[#allocation5 + $0x6d8] sm:$0xff]
        %v400 = vld [vmem:[#allocation5 + $0x6e0] sm:$0xff]
        %v401 = vld [vmem:[#allocation5 + $0x6e8] sm:$0xff]
        %v402 = vld [vmem:[#allocation5 + $0x6f0] sm:$0xff]
        %v403 = vld [vmem:[#allocation5 + $0x6f8] sm:$0xff]
        %v404 = vld [vmem:[#allocation5 + $0x700] sm:$0xff]
        %v405 = vld [vmem:[#allocation5 + $0x708] sm:$0xff]
        %v406 = vld [vmem:[#allocation5 + $0x710] sm:$0xff]
        %v407 = vld [vmem:[#allocation5 + $0x718] sm:$0xff]
        %v408 = vld [vmem:[#allocation5 + $0x720] sm:$0xff]
        %v409 = vld [vmem:[#allocation5 + $0x728] sm:$0xff]
        %v410 = vld [vmem:[#allocation5 + $0x730] sm:$0xff]
        %v411 = vld [vmem:[#allocation5 + $0x738] sm:$0xff]
        %v412 = vld [vmem:[#allocation5 + $0x740] sm:$0xff]
        %v413 = vld [vmem:[#allocation5 + $0x748] sm:$0xff]
        %v414 = vld [vmem:[#allocation5 + $0x750] sm:$0xff]
        %v415 = vld [vmem:[#allocation5 + $0x758] sm:$0xff]
        %v416 = vld [vmem:[#allocation5 + $0x760] sm:$0xff]
        %v417 = vld [vmem:[#allocation5 + $0x768] sm:$0xff]
        %v418 = vld [vmem:[#allocation5 + $0x770] sm:$0xff]
        %v419 = vld [vmem:[#allocation5 + $0x778] sm:$0xff]
        %v420 = vld [vmem:[#allocation5 + $0x780] sm:$0xff]
        %v421 = vld [vmem:[#allocation5 + $0x788] sm:$0xff]
        %v422 = vld [vmem:[#allocation5 + $0x790] sm:$0xff]
        %v423 = vld [vmem:[#allocation5 + $0x798] sm:$0xff]
        %v424 = vld [vmem:[#allocation5 + $0x7a0] sm:$0xff]
        %v425 = vld [vmem:[#allocation5 + $0x7a8] sm:$0xff]
        %v426 = vld [vmem:[#allocation5 + $0x7b0] sm:$0xff]
        %v427 = vld [vmem:[#allocation5 + $0x7b8] sm:$0xff]
        %v428 = vld [vmem:[#allocation5 + $0x7c0] sm:$0xff]
        %v429 = vld [vmem:[#allocation5 + $0x7c8] sm:$0xff]
        %v430 = vld [vmem:[#allocation5 + $0x7d0] sm:$0xff]
        %v431 = vld [vmem:[#allocation5 + $0x7d8] sm:$0xff]
        %v432 = vld [vmem:[#allocation5 + $0x7e0] sm:$0xff]
        %v433 = vld [vmem:[#allocation5 + $0x7e8] sm:$0xff]
        %v434 = vld [vmem:[#allocation5 + $0x7f0] sm:$0xff]
        %v435 = vld [vmem:[#allocation5 + $0x7f8] sm:$0xff]
        %437 = vst [vmem:[#allocation1] ss:$4 sm:$0xff] %v179
        %v438 = vld.sshfl [vmem:[#allocation1] sm:$0xff pattern:$0x73625140]
        %v439 = vld.sshfl [vmem:[#allocation1 + $0x8] sm:$0xff pattern:$0x73625140]
        %442 = vmatpush.msra.mxu0 %v300
        %443 = vmatpush.msra.mxu0 %v292
        %444 = vmatpush.msra.mxu0 %v284
        %445 = vmatpush.msra.mxu0 %v276
        %446 = vmatpush.msra.mxu0 %v268
        %447 = vmatpush.msra.mxu0 %v260
        %448 = vmatpush.msra.mxu0 %v252
        %449 = vmatpush.msra.mxu0 %v244
        %450 = vmatpush.msra.mxu0 %v236
        %451 = vmatpush.msra.mxu0 %v228
        %452 = vmatpush.msra.mxu0 %v220
        %453 = vmatpush.msra.mxu0 %v212
        %454 = vmatpush.msra.mxu0 %v204
        %455 = vmatpush.msra.mxu0 %v196
        %456 = vmatpush.msra.mxu0 %v188
        %457 = vmatpush.msra.mxu0 %v180
        %458 = vmatmul.f32.gmra.mxu0 %v438
        %v459 = vpop.f32.mrf.mxu0
        %v460 = vadd.f32 0.0, %v459
        %461 = vdwg.mxu0
        %462 = vmatpush.msra.mxu0 %v428
        %463 = vmatpush.msra.mxu0 %v420
        %464 = vmatpush.msra.mxu0 %v412
        %465 = vmatpush.msra.mxu0 %v404
        %466 = vmatpush.msra.mxu0 %v396
        %467 = vmatpush.msra.mxu0 %v388
        %468 = vmatpush.msra.mxu0 %v380
        %469 = vmatpush.msra.mxu0 %v372
        %470 = vmatpush.msra.mxu0 %v364
        %471 = vmatpush.msra.mxu0 %v356
        %472 = vmatpush.msra.mxu0 %v348
        %473 = vmatpush.msra.mxu0 %v340
        %474 = vmatpush.msra.mxu0 %v332
        %475 = vmatpush.msra.mxu0 %v324
        %476 = vmatpush.msra.mxu0 %v316
        %477 = vmatpush.msra.mxu0 %v308
        %478 = vmatmul.f32.gmra.mxu0 %v439
        %v479 = vpop.f32.mrf.mxu0
        %v480 = vadd.f32 %v460, %v479
        %481 = vdwg.mxu0
        %482 = vmatpush.msra.mxu0 %v301
        %483 = vmatpush.msra.mxu0 %v293
        %484 = vmatpush.msra.mxu0 %v285
        %485 = vmatpush.msra.mxu0 %v277
        %486 = vmatpush.msra.mxu0 %v269
        %487 = vmatpush.msra.mxu0 %v261
        %488 = vmatpush.msra.mxu0 %v253
        %489 = vmatpush.msra.mxu0 %v245
        %490 = vmatpush.msra.mxu0 %v237
        %491 = vmatpush.msra.mxu0 %v229
        %492 = vmatpush.msra.mxu0 %v221
        %493 = vmatpush.msra.mxu0 %v213
        %494 = vmatpush.msra.mxu0 %v205
        %495 = vmatpush.msra.mxu0 %v197
        %496 = vmatpush.msra.mxu0 %v189
        %497 = vmatpush.msra.mxu0 %v181
        %498 = vmatmul.f32.gmra.mxu0 %v438
        %v499 = vpop.f32.mrf.mxu0
        %v500 = vadd.f32 0.0, %v499
        %501 = vdwg.mxu0
        %502 = vmatpush.msra.mxu0 %v429
        %503 = vmatpush.msra.mxu0 %v421
        %504 = vmatpush.msra.mxu0 %v413
        %505 = vmatpush.msra.mxu0 %v405
        %506 = vmatpush.msra.mxu0 %v397
        %507 = vmatpush.msra.mxu0 %v389
        %508 = vmatpush.msra.mxu0 %v381
        %509 = vmatpush.msra.mxu0 %v373
        %510 = vmatpush.msra.mxu0 %v365
        %511 = vmatpush.msra.mxu0 %v357
        %512 = vmatpush.msra.mxu0 %v349
        %513 = vmatpush.msra.mxu0 %v341
        %514 = vmatpush.msra.mxu0 %v333
        %515 = vmatpush.msra.mxu0 %v325
        %516 = vmatpush.msra.mxu0 %v317
        %517 = vmatpush.msra.mxu0 %v309
        %518 = vmatmul.f32.gmra.mxu0 %v439
        %v519 = vpop.f32.mrf.mxu0
        %v520 = vadd.f32 %v500, %v519
        %521 = vdwg.mxu0
        %522 = vmatpush.msra.mxu0 %v302
        %523 = vmatpush.msra.mxu0 %v294
        %524 = vmatpush.msra.mxu0 %v286
        %525 = vmatpush.msra.mxu0 %v278
        %526 = vmatpush.msra.mxu0 %v270
        %527 = vmatpush.msra.mxu0 %v262
        %528 = vmatpush.msra.mxu0 %v254
        %529 = vmatpush.msra.mxu0 %v246
        %530 = vmatpush.msra.mxu0 %v238
        %531 = vmatpush.msra.mxu0 %v230
        %532 = vmatpush.msra.mxu0 %v222
        %533 = vmatpush.msra.mxu0 %v214
        %534 = vmatpush.msra.mxu0 %v206
        %535 = vmatpush.msra.mxu0 %v198
        %536 = vmatpush.msra.mxu0 %v190
        %537 = vmatpush.msra.mxu0 %v182
        %538 = vmatmul.f32.gmra.mxu0 %v438
        %v539 = vpop.f32.mrf.mxu0
        %v540 = vadd.f32 0.0, %v539
        %541 = vdwg.mxu0
        %542 = vmatpush.msra.mxu0 %v430
        %543 = vmatpush.msra.mxu0 %v422
        %544 = vmatpush.msra.mxu0 %v414
        %545 = vmatpush.msra.mxu0 %v406
        %546 = vmatpush.msra.mxu0 %v398
        %547 = vmatpush.msra.mxu0 %v390
        %548 = vmatpush.msra.mxu0 %v382
        %549 = vmatpush.msra.mxu0 %v374
        %550 = vmatpush.msra.mxu0 %v366
        %551 = vmatpush.msra.mxu0 %v358
        %552 = vmatpush.msra.mxu0 %v350
        %553 = vmatpush.msra.mxu0 %v342
        %554 = vmatpush.msra.mxu0 %v334
        %555 = vmatpush.msra.mxu0 %v326
        %556 = vmatpush.msra.mxu0 %v318
        %557 = vmatpush.msra.mxu0 %v310
        %558 = vmatmul.f32.gmra.mxu0 %v439
        %v559 = vpop.f32.mrf.mxu0
        %v560 = vadd.f32 %v540, %v559
        %561 = vdwg.mxu0
        %562 = vmatpush.msra.mxu0 %v303
        %563 = vmatpush.msra.mxu0 %v295
        %564 = vmatpush.msra.mxu0 %v287
        %565 = vmatpush.msra.mxu0 %v279
        %566 = vmatpush.msra.mxu0 %v271
        %567 = vmatpush.msra.mxu0 %v263
        %568 = vmatpush.msra.mxu0 %v255
        %569 = vmatpush.msra.mxu0 %v247
        %570 = vmatpush.msra.mxu0 %v239
        %571 = vmatpush.msra.mxu0 %v231
        %572 = vmatpush.msra.mxu0 %v223
        %573 = vmatpush.msra.mxu0 %v215
        %574 = vmatpush.msra.mxu0 %v207
        %575 = vmatpush.msra.mxu0 %v199
        %576 = vmatpush.msra.mxu0 %v191
        %577 = vmatpush.msra.mxu0 %v183
        %578 = vmatmul.f32.gmra.mxu0 %v438
        %v579 = vpop.f32.mrf.mxu0
        %v580 = vadd.f32 0.0, %v579
        %581 = vdwg.mxu0
        %582 = vmatpush.msra.mxu0 %v431
        %583 = vmatpush.msra.mxu0 %v423
        %584 = vmatpush.msra.mxu0 %v415
        %585 = vmatpush.msra.mxu0 %v407
        %586 = vmatpush.msra.mxu0 %v399
        %587 = vmatpush.msra.mxu0 %v391
        %588 = vmatpush.msra.mxu0 %v383
        %589 = vmatpush.msra.mxu0 %v375
        %590 = vmatpush.msra.mxu0 %v367
        %591 = vmatpush.msra.mxu0 %v359
        %592 = vmatpush.msra.mxu0 %v351
        %593 = vmatpush.msra.mxu0 %v343
        %594 = vmatpush.msra.mxu0 %v335
        %595 = vmatpush.msra.mxu0 %v327
        %596 = vmatpush.msra.mxu0 %v319
        %597 = vmatpush.msra.mxu0 %v311
        %598 = vmatmul.f32.gmra.mxu0 %v439
        %v599 = vpop.f32.mrf.mxu0
        %v600 = vadd.f32 %v580, %v599
        %601 = vdwg.mxu0
        %602 = vmatpush.msra.mxu0 %v304
        %603 = vmatpush.msra.mxu0 %v296
        %604 = vmatpush.msra.mxu0 %v288
        %605 = vmatpush.msra.mxu0 %v280
        %606 = vmatpush.msra.mxu0 %v272
        %607 = vmatpush.msra.mxu0 %v264
        %608 = vmatpush.msra.mxu0 %v256
        %609 = vmatpush.msra.mxu0 %v248
        %610 = vmatpush.msra.mxu0 %v240
        %611 = vmatpush.msra.mxu0 %v232
        %612 = vmatpush.msra.mxu0 %v224
        %613 = vmatpush.msra.mxu0 %v216
        %614 = vmatpush.msra.mxu0 %v208
        %615 = vmatpush.msra.mxu0 %v200
        %616 = vmatpush.msra.mxu0 %v192
        %617 = vmatpush.msra.mxu0 %v184
        %618 = vmatmul.f32.gmra.mxu0 %v438
        %v619 = vpop.f32.mrf.mxu0
        %v620 = vadd.f32 0.0, %v619
        %621 = vdwg.mxu0
        %622 = vmatpush.msra.mxu0 %v432
        %623 = vmatpush.msra.mxu0 %v424
        %624 = vmatpush.msra.mxu0 %v416
        %625 = vmatpush.msra.mxu0 %v408
        %626 = vmatpush.msra.mxu0 %v400
        %627 = vmatpush.msra.mxu0 %v392
        %628 = vmatpush.msra.mxu0 %v384
        %629 = vmatpush.msra.mxu0 %v376
        %630 = vmatpush.msra.mxu0 %v368
        %631 = vmatpush.msra.mxu0 %v360
        %632 = vmatpush.msra.mxu0 %v352
        %633 = vmatpush.msra.mxu0 %v344
        %634 = vmatpush.msra.mxu0 %v336
        %635 = vmatpush.msra.mxu0 %v328
        %636 = vmatpush.msra.mxu0 %v320
        %637 = vmatpush.msra.mxu0 %v312
        %638 = vmatmul.f32.gmra.mxu0 %v439
        %v639 = vpop.f32.mrf.mxu0
        %v640 = vadd.f32 %v620, %v639
        %641 = vdwg.mxu0
        %642 = vmatpush.msra.mxu0 %v305
        %643 = vmatpush.msra.mxu0 %v297
        %644 = vmatpush.msra.mxu0 %v289
        %645 = vmatpush.msra.mxu0 %v281
        %646 = vmatpush.msra.mxu0 %v273
        %647 = vmatpush.msra.mxu0 %v265
        %648 = vmatpush.msra.mxu0 %v257
        %649 = vmatpush.msra.mxu0 %v249
        %650 = vmatpush.msra.mxu0 %v241
        %651 = vmatpush.msra.mxu0 %v233
        %652 = vmatpush.msra.mxu0 %v225
        %653 = vmatpush.msra.mxu0 %v217
        %654 = vmatpush.msra.mxu0 %v209
        %655 = vmatpush.msra.mxu0 %v201
        %656 = vmatpush.msra.mxu0 %v193
        %657 = vmatpush.msra.mxu0 %v185
        %658 = vmatmul.f32.gmra.mxu0 %v438
        %v659 = vpop.f32.mrf.mxu0
        %v660 = vadd.f32 0.0, %v659
        %661 = vdwg.mxu0
        %662 = vmatpush.msra.mxu0 %v433
        %663 = vmatpush.msra.mxu0 %v425
        %664 = vmatpush.msra.mxu0 %v417
        %665 = vmatpush.msra.mxu0 %v409
        %666 = vmatpush.msra.mxu0 %v401
        %667 = vmatpush.msra.mxu0 %v393
        %668 = vmatpush.msra.mxu0 %v385
        %669 = vmatpush.msra.mxu0 %v377
        %670 = vmatpush.msra.mxu0 %v369
        %671 = vmatpush.msra.mxu0 %v361
        %672 = vmatpush.msra.mxu0 %v353
        %673 = vmatpush.msra.mxu0 %v345
        %674 = vmatpush.msra.mxu0 %v337
        %675 = vmatpush.msra.mxu0 %v329
        %676 = vmatpush.msra.mxu0 %v321
        %677 = vmatpush.msra.mxu0 %v313
        %678 = vmatmul.f32.gmra.mxu0 %v439
        %v679 = vpop.f32.mrf.mxu0
        %v680 = vadd.f32 %v660, %v679
        %681 = vdwg.mxu0
        %682 = vmatpush.msra.mxu0 %v306
        %683 = vmatpush.msra.mxu0 %v298
        %684 = vmatpush.msra.mxu0 %v290
        %685 = vmatpush.msra.mxu0 %v282
        %686 = vmatpush.msra.mxu0 %v274
        %687 = vmatpush.msra.mxu0 %v266
        %688 = vmatpush.msra.mxu0 %v258
        %689 = vmatpush.msra.mxu0 %v250
        %690 = vmatpush.msra.mxu0 %v242
        %691 = vmatpush.msra.mxu0 %v234
        %692 = vmatpush.msra.mxu0 %v226
        %693 = vmatpush.msra.mxu0 %v218
        %694 = vmatpush.msra.mxu0 %v210
        %695 = vmatpush.msra.mxu0 %v202
        %696 = vmatpush.msra.mxu0 %v194
        %697 = vmatpush.msra.mxu0 %v186
        %698 = vmatmul.f32.gmra.mxu0 %v438
        %v699 = vpop.f32.mrf.mxu0
        %v700 = vadd.f32 0.0, %v699
        %701 = vdwg.mxu0
        %702 = vmatpush.msra.mxu0 %v434
        %703 = vmatpush.msra.mxu0 %v426
        %704 = vmatpush.msra.mxu0 %v418
        %705 = vmatpush.msra.mxu0 %v410
        %706 = vmatpush.msra.mxu0 %v402
        %707 = vmatpush.msra.mxu0 %v394
        %708 = vmatpush.msra.mxu0 %v386
        %709 = vmatpush.msra.mxu0 %v378
        %710 = vmatpush.msra.mxu0 %v370
        %711 = vmatpush.msra.mxu0 %v362
        %712 = vmatpush.msra.mxu0 %v354
        %713 = vmatpush.msra.mxu0 %v346
        %714 = vmatpush.msra.mxu0 %v338
        %715 = vmatpush.msra.mxu0 %v330
        %716 = vmatpush.msra.mxu0 %v322
        %717 = vmatpush.msra.mxu0 %v314
        %718 = vmatmul.f32.gmra.mxu0 %v439
        %v719 = vpop.f32.mrf.mxu0
        %v720 = vadd.f32 %v700, %v719
        %721 = vdwg.mxu0
        %722 = vmatpush.msra.mxu0 %v307
        %723 = vmatpush.msra.mxu0 %v299
        %724 = vmatpush.msra.mxu0 %v291
        %725 = vmatpush.msra.mxu0 %v283
        %726 = vmatpush.msra.mxu0 %v275
        %727 = vmatpush.msra.mxu0 %v267
        %728 = vmatpush.msra.mxu0 %v259
        %729 = vmatpush.msra.mxu0 %v251
        %730 = vmatpush.msra.mxu0 %v243
        %731 = vmatpush.msra.mxu0 %v235
        %732 = vmatpush.msra.mxu0 %v227
        %733 = vmatpush.msra.mxu0 %v219
        %734 = vmatpush.msra.mxu0 %v211
        %735 = vmatpush.msra.mxu0 %v203
        %736 = vmatpush.msra.mxu0 %v195
        %737 = vmatpush.msra.mxu0 %v187
        %738 = vmatmul.f32.gmra.mxu0 %v438
        %v739 = vpop.f32.mrf.mxu0
        %v740 = vadd.f32 0.0, %v739
        %741 = vdwg.mxu0
        %742 = vmatpush.msra.mxu0 %v435
        %743 = vmatpush.msra.mxu0 %v427
        %744 = vmatpush.msra.mxu0 %v419
        %745 = vmatpush.msra.mxu0 %v411
        %746 = vmatpush.msra.mxu0 %v403
        %747 = vmatpush.msra.mxu0 %v395
        %748 = vmatpush.msra.mxu0 %v387
        %749 = vmatpush.msra.mxu0 %v379
        %750 = vmatpush.msra.mxu0 %v371
        %751 = vmatpush.msra.mxu0 %v363
        %752 = vmatpush.msra.mxu0 %v355
        %753 = vmatpush.msra.mxu0 %v347
        %754 = vmatpush.msra.mxu0 %v339
        %755 = vmatpush.msra.mxu0 %v331
        %756 = vmatpush.msra.mxu0 %v323
        %757 = vmatpush.msra.mxu0 %v315
        %758 = vmatmul.f32.gmra.mxu0 %v439
        %v759 = vpop.f32.mrf.mxu0
        %v760 = vadd.f32 %v740, %v759
        %761 = vdwg.mxu0
        %v770 = vrot.slane %v520, 6
        %v771 = vrot.slane %v560, 4
        %v772 = vrot.slane %v600, 2
        %v773 = vrot.slane %v680, 6
        %v774 = vrot.slane %v720, 4
        %v775 = vrot.slane %v760, 2
        %vm776 = vcmask 1041408
        %v777 = vsel %vm776, %v480, %v770
        %vm778 = vcmask 1045508
        %v779 = vsel %vm778, %v771, %v772
        %vm780 = vcmask 1043456
        %v781 = vsel %vm780, %v777, %v779
        %v782 = vsel %vm776, %v640, %v773
        %v783 = vsel %vm778, %v774, %v775
        %v784 = vsel %vm780, %v782, %v783
        %787 = vst [vmem:[%s178] sm:$0xff] %v781
        %788 = vst [vmem:[%s178 + $0x8] sm:$0xff] %v784
        %s789 = sand.u32 %s75, 1
        %s790 = scalar_lea.sflag [#allocation4], %s789
        %s791 = sand.u32 %s75, 1
        %s792 = smul.addr %s791, 16
        %s793 = scalar_lea.vmem [#allocation7], %s792
        // Predicated region
        $region37: #{tpu_custom_call.1} parent=27 // pred_check
          %p794 = pneg %p85
        $region38: #{tpu_custom_call.1} parent=27 // pred_check_branch
          %796 = sbr.rel (%p794) target = $region40
        $region39: #{tpu_custom_call.1} parent=27 // pred_region
          %798 = vsyncadd %s790, 0
          %s799 = smul.addr %s20, 8
          %s800 = smul.addr %s799, 2
          %s801 = scalar_lea.hbm %s2, %s800
          %s803 = sshll.u32 %s793, 4
          %s804 = int_to_ptr.vmem [resolvable:$true] %s803
          %s805 = sshll.u32 %s801, 4
          %s806 = int_to_ptr.hbm [resolvable:$true] %s805
          %808 = dma.vmem_to_hbm [thread:$0]  %s804, 256, %s806, %s790
        $region40: #{tpu_custom_call.1} parent=27 // pred_fallthru
          _
      $region28: #{tpu_custom_call.1} parent=5 // pred_fallthru
        _
      %p809 = scmp.le.s32.totalorder 2, %s15
      // Predicated region
      $region41: #{tpu_custom_call.1} parent=5 // pred_check
        %p810 = pneg %p809
      $region42: #{tpu_custom_call.1} parent=5 // pred_check_branch
        %812 = sbr.rel (%p810) target = $region44
      $region43: #{tpu_custom_call.1} parent=5 // pred_region
        %s813 = ssub.s32 %s15, 2
        // Predicated region
        $region45: #{tpu_custom_call.1} parent=43 // pred_check
          %p814 = pneg %p91
        $region46: #{tpu_custom_call.1} parent=43 // pred_check_branch
          %816 = sbr.rel (%p814) target = $region48
        $region47: #{tpu_custom_call.1} parent=43 // pred_region
          %s817 = sand.u32 %s76, 1
          %s818 = scalar_lea.sflag [#allocation4], %s817
          %s819 = sand.u32 %s76, 1
          %s820 = smul.addr %s819, 16
          %s821 = scalar_lea.vmem [#allocation7], %s820
          %823 = dma.done %s818, 256
        $region48: #{tpu_custom_call.1} parent=43 // pred_fallthru
          _
      $region44: #{tpu_custom_call.1} parent=5 // pred_fallthru
        _
    $region6: #{tpu_custom_call.1} parent=1 // loop_footer
      %s19 = sadd.s32 1, %s15
    $region7: #{tpu_custom_call.1} parent=1 // loop_footer_branch
      %14 = sbr.rel target = $region3
    $region8: #{tpu_custom_call.1} parent=1 // loop_exit
      _
    %824 = vsyncpa [#allocation3], 1
    %s825 = scalar_lea.sflag [#allocation3], 1
    %826 = vsyncpa %s825, 1
    %827 = vsyncpa [#allocation6], 1
    %828 = vsyncpa [#allocation4], 1
    %s829 = scalar_lea.sflag [#allocation4], 1
    %830 = vsyncpa %s829, 1

</llo_original>
